<compile_context>
chip_gen: v5e
topology: v5e:2x2
jax: 0.10.0
libtpu: 0.0.40
codegen_flags: <defaults>
</compile_context>

<pallas_src>
import jax
import jax.numpy as jnp
from jax.experimental import pallas as pl
from jax.experimental.pallas import tpu as pltpu


def _round_up(a, b):
    return ((a + b - 1) // b) * b


def moe_ffn_kernel(tile_expert_ref, x_ref, rw_ref, w1_ref, w2_ref, o_ref, acc_ref):
    """Grid = (num_token_tiles, num_h_tiles).

    Each token tile holds TM rows all routed to one expert (tile->expert mapping lives in
    the scalar-prefetched ref and is consumed only by the weight index_maps).  Axis 1 tiles
    the hidden dimension; the second matmul is accumulated per H-chunk into acc_ref (f32).
    """
    del tile_expert_ref  # used by the index_maps, not the body
    j = pl.program_id(1)

    @pl.when(j == 0)
    def _():
        acc_ref[...] = jnp.zeros_like(acc_ref)

    x = x_ref[...]                                                      # (TM, D)
    h = jnp.dot(x, w1_ref[...], preferred_element_type=jnp.float32)    # (TM, TH) f32
    h = jnp.maximum(h, 0.0).astype(x.dtype)                            # ReLU, back to MXU dtype
    acc_ref[...] += jnp.dot(h, w2_ref[...], preferred_element_type=jnp.float32)  # (TM, D)

    @pl.when(j == pl.num_programs(1) - 1)
    def _():
        o_ref[...] = rw_ref[...] * acc_ref[...]                         # per-row combine weight


def moe_ffn_forward(xs, gate_w, w1, w2, n_expert_activated, *, tm=None, compute_dtype=None):
    """xs: (B, L, D); gate_w: (n_expert, D) (torch Linear layout);
    w1: (n_expert, D, H); w2: (n_expert, H, D)."""
    B, L, D = xs.shape
    n_expert, _, H = w1.shape
    k = n_expert_activated
    N = B * L
    A = N * k                                   # total (token, expert) assignments
    x2d = xs.reshape(N, D)

    # ---- gating (tiny glue): router -> top-k -> softmax
    router = x2d @ gate_w.T                                             # (N, E)
    logits, sel = jax.lax.top_k(router, k)                              # (N, k)
    weights = jax.nn.softmax(logits.astype(jnp.float32), axis=-1)       # (N, k) f32

    mxu_dtype = jnp.dtype(compute_dtype) if compute_dtype is not None else jnp.dtype(xs.dtype)
    itemsize = mxu_dtype.itemsize

    # ---- tile sizing (token rows TM, hidden chunk TH) under a VMEM budget
    if tm is None:
        tm = max(8, min(512, _round_up(max(A // n_expert, 1), 8)))
        # keep x (double-buffered), out (double-buffered, f32), acc (f32), rw within ~8 MiB
        row_bytes = D * (2 * itemsize + 2 * 4 + 4) + 8
        tm_cap = max(8, ((8 * 2**20) // row_bytes) // 8 * 8)
        tm = min(tm, tm_cap)
    TM = tm

    TH = H
    while TH % 2 == 0 and (TH // 2) % 128 == 0 and 2 * D * TH * itemsize > 8 * 2**20:
        TH //= 2                                # keep (D,TH)+(TH,D) weight tiles <= ~8 MiB
    num_h = H // TH

    P = _round_up(A + n_expert * (TM - 1), TM)  # static upper bound on padded rows
    num_tiles = P // TM

    # ---- group assignments by expert, pad each group to TM-row tile boundaries
    sel_flat = sel.reshape(-1).astype(jnp.int32)                        # (A,)
    tok_flat = jnp.repeat(jnp.arange(N, dtype=jnp.int32), k)            # (A,)
    w_flat = weights.reshape(-1)                                        # (A,) f32

    order = jnp.argsort(sel_flat)
    s_expert = sel_flat[order]
    s_token = tok_flat[order]
    s_weight = w_flat[order]

    gs = jnp.bincount(sel_flat, length=n_expert).astype(jnp.int32)      # group sizes (E,)
    grp_start = jnp.concatenate([jnp.zeros((1,), jnp.int32), jnp.cumsum(gs)[:-1]])
    pgs = ((gs + TM - 1) // TM) * TM                                    # padded group sizes
    pad_start = jnp.concatenate([jnp.zeros((1,), jnp.int32), jnp.cumsum(pgs)[:-1]])
    pad_end = jnp.cumsum(pgs)

    ranks = jnp.arange(A, dtype=jnp.int32) - grp_start[s_expert]        # rank within group
    dest = pad_start[s_expert] + ranks                                  # unique rows < P

    row_token = jnp.zeros((P,), jnp.int32).at[dest].set(s_token)        # padding -> token 0
    row_weight = jnp.zeros((P,), jnp.float32).at[dest].set(s_weight)    # padding -> weight 0
    x_rows = x2d[row_token]                                             # (P, D) gathered tokens

    tile_start = jnp.arange(num_tiles, dtype=jnp.int32) * TM
    tile_expert = jnp.sum(tile_start[:, None] >= pad_end[None, :], axis=1)
    tile_expert = jnp.minimum(tile_expert, n_expert - 1).astype(jnp.int32)

    # Optional low-precision MXU path for real (lane-dense, >=128) shapes; accumulate stays f32.
    if compute_dtype is not None:
        x_rows = x_rows.astype(compute_dtype)
        w1 = w1.astype(compute_dtype)
        w2 = w2.astype(compute_dtype)

    # VMEM need: double-buffered inputs/outputs + single f32 accumulator scratch.
    need = (2 * (TM * D * itemsize + TM * 4 + D * TH * itemsize + TH * D * itemsize
                 + TM * D * 4)
            + TM * D * 4)
    vmem_limit = int(min(64 * 2**20, max(16 * 2**20, int(need * 1.3) + (2 << 20))))

    cost = pl.CostEstimate(
        flops=int(4 * P * D * H),
        transcendentals=0,
        bytes_accessed=int(itemsize * (P * D + n_expert * 2 * D * H) + 4 * (P * D + P)),
    )

    y_rows = pl.pallas_call(
        moe_ffn_kernel,
        out_shape=jax.ShapeDtypeStruct((P, D), jnp.float32),
        grid_spec=pltpu.PrefetchScalarGridSpec(
            num_scalar_prefetch=1,
            grid=(num_tiles, num_h),
            in_specs=[
                pl.BlockSpec((TM, D), lambda t, j, te: (t, 0)),                  # token rows
                pl.BlockSpec((TM, 1), lambda t, j, te: (t, 0)),                  # combine w
                pl.BlockSpec((None, D, TH), lambda t, j, te: (te[t], 0, j)),     # W1[expert]
                pl.BlockSpec((None, TH, D), lambda t, j, te: (te[t], j, 0)),     # W2[expert]
            ],
            out_specs=pl.BlockSpec((TM, D), lambda t, j, te: (t, 0)),
            scratch_shapes=[pltpu.VMEM((TM, D), jnp.float32)],
        ),
        compiler_params=pltpu.CompilerParams(
            dimension_semantics=("parallel", "arbitrary"),
            vmem_limit_bytes=vmem_limit,
        ),
        cost_estimate=cost,
    )(tile_expert, x_rows, row_weight.reshape(P, 1), w1, w2)

    # ---- combine: f32 scatter-add back to tokens (padding rows add exact zeros), one cast.
    out2d = jnp.zeros((N, D), jnp.float32).at[row_token].add(y_rows)
    return out2d.astype(xs.dtype).reshape(B, L, D)


def moe_ffn_reference(xs, gate_w, w1, w2, n_expert_activated):
    """Plain-JAX replica of the torch forward for verification."""
    B, L, D = xs.shape
    n_expert = w1.shape[0]
    x2d = xs.reshape(-1, D)
    router = x2d @ gate_w.T
    logits, sel = jax.lax.top_k(router, n_expert_activated)
    weights = jax.nn.softmax(logits.astype(jnp.float32), axis=-1).astype(xs.dtype)
    out = jnp.zeros_like(x2d)
    for e in range(n_expert):
        y = jnp.maximum(x2d @ w1[e], 0.0) @ w2[e]
        w_e = jnp.sum(jnp.where(sel == e, weights, 0.0), axis=1, keepdims=True)
        out = out + w_e * y
    return out.reshape(B, L, D)


if __name__ == "__main__":
    # Small shapes consistent with the module: xs (B, L, D)
    B, L, D, H = 2, 8, 32, 64
    n_expert, n_expert_activated = 8, 2

    key = jax.random.PRNGKey(0)
    k_x, k_g, k_w1, k_w2 = jax.random.split(key, 4)

    xs = jax.random.normal(k_x, (B, L, D), dtype=jnp.float32)
    gate_w = 0.02 * jax.random.normal(k_g, (n_expert, D), dtype=jnp.float32)
    w1 = 0.02 * jax.random.normal(k_w1, (n_expert, D, H), dtype=jnp.float32)
    w2 = 0.02 * jax.random.normal(k_w2, (n_expert, H, D), dtype=jnp.float32)

    out = moe_ffn_forward(xs, gate_w, w1, w2, n_expert_activated)
    out = jax.block_until_ready(out)

    ref = moe_ffn_reference(xs, gate_w, w1, w2, n_expert_activated)
    assert out.shape == (B, L, D)
    assert jnp.allclose(out, ref, atol=1e-5, rtol=1e-5), "mismatch vs reference"

    print("KERNEL_OK")
</pallas_src>

<mosaic_0001>
module attributes {stable_mosaic.version = 11 : i64} {
  func.func @moe_ffn_kernel(%arg0: i32, %arg1: i32, %arg2: memref<11xi32, #tpu.memory_space<smem>>, %arg3: memref<8x32xf32, #tpu.memory_space<vmem>>, %arg4: memref<8x1xf32, #tpu.memory_space<vmem>>, %arg5: memref<1x32x64xf32, #tpu.memory_space<vmem>>, %arg6: memref<1x64x32xf32, #tpu.memory_space<vmem>>, %arg7: memref<8x32xf32, #tpu.memory_space<vmem>>, %arg8: memref<8x32xf32, #tpu.memory_space<vmem>>) attributes {dimension_semantics = [#tpu.dimension_semantics<parallel>, #tpu.dimension_semantics<arbitrary>], iteration_bounds = array<i64: 11, 1>, scalar_prefetch = 1 : i64, scratch_operands = 1 : i64, tpu.core_type = #tpu.core_type<tc>, window_params = [{transform_indices = @transform_0, window_bounds = array<i64: 8, 32>}, {transform_indices = @transform_1, window_bounds = array<i64: 8, 1>}, {transform_indices = @transform_2, window_bounds = array<i64: 1, 32, 64>}, {transform_indices = @transform_3, window_bounds = array<i64: 1, 64, 32>}, {transform_indices = @transform_4, window_bounds = array<i64: 8, 32>}]} {
    %c0_i32 = arith.constant 0 : i32
    %0 = arith.cmpi eq, %arg1, %c0_i32 : i32
    %1 = arith.extui %0 : i1 to i32
    %c0_i32_0 = arith.constant 0 : i32
    %2 = arith.cmpi ne, %1, %c0_i32_0 : i32
    scf.if %2 {
      %cst_16 = arith.constant 0.000000e+00 : f32
      %18 = vector.broadcast %cst_16 : f32 to vector<8x32xf32>
      %c0_17 = arith.constant 0 : index
      %c0_18 = arith.constant 0 : index
      %19 = vector.load %arg8[%c0_17, %c0_18] : memref<8x32xf32, #tpu.memory_space<vmem>>, vector<8x32xf32>
      tpu.vector_store %arg8[%c0_17, %c0_18], %18 {strides = array<i32>} : memref<8x32xf32, #tpu.memory_space<vmem>>, vector<8x32xf32>,
    } else {
    }
    %c0 = arith.constant 0 : index
    %c0_1 = arith.constant 0 : index
    %3 = vector.load %arg3[%c0, %c0_1] : memref<8x32xf32, #tpu.memory_space<vmem>>, vector<8x32xf32>
    %c0_2 = arith.constant 0 : index
    %c0_3 = arith.constant 0 : index
    %c0_4 = arith.constant 0 : index
    %4 = vector.load %arg5[%c0_2, %c0_3, %c0_4] : memref<1x32x64xf32, #tpu.memory_space<vmem>>, vector<1x32x64xf32>
    %5 = vector.shape_cast %4 : vector<1x32x64xf32> to vector<32x64xf32>
    %cst = arith.constant dense<0.000000e+00> : vector<8x64xf32>
    %6 = tpu.matmul %3, %5, %cst {dimension_numbers = #tpu.dot_dimension_numbers<[1], [0], [0], [1], [0, 0, 1, 1], [], []>} : vector<8x32xf32>, vector<32x64xf32>, vector<8x64xf32> -> vector<8x64xf32>
    %cst_5 = arith.constant 0.000000e+00 : f32
    %7 = vector.broadcast %cst_5 : f32 to vector<8x64xf32>
    %8 = arith.maximumf %6, %7 : vector<8x64xf32>
    %c0_6 = arith.constant 0 : index
    %c0_7 = arith.constant 0 : index
    %9 = vector.load %arg8[%c0_6, %c0_7] : memref<8x32xf32, #tpu.memory_space<vmem>>, vector<8x32xf32>
    %c0_8 = arith.constant 0 : index
    %c0_9 = arith.constant 0 : index
    %c0_10 = arith.constant 0 : index
    %10 = vector.load %arg6[%c0_8, %c0_9, %c0_10] : memref<1x64x32xf32, #tpu.memory_space<vmem>>, vector<1x64x32xf32>
    %11 = vector.shape_cast %10 : vector<1x64x32xf32> to vector<64x32xf32>
    %cst_11 = arith.constant dense<0.000000e+00> : vector<8x32xf32>
    %12 = tpu.matmul %8, %11, %cst_11 {dimension_numbers = #tpu.dot_dimension_numbers<[1], [0], [0], [1], [0, 0, 1, 1], [], []>} : vector<8x64xf32>, vector<64x32xf32>, vector<8x32xf32> -> vector<8x32xf32>
    %13 = arith.addf %9, %12 : vector<8x32xf32>
    %c0_12 = arith.constant 0 : index
    %c0_13 = arith.constant 0 : index
    %14 = vector.load %arg8[%c0_12, %c0_13] : memref<8x32xf32, #tpu.memory_space<vmem>>, vector<8x32xf32>
    tpu.vector_store %arg8[%c0_12, %c0_13], %13 {strides = array<i32>} : memref<8x32xf32, #tpu.memory_space<vmem>>, vector<8x32xf32>,
    %c0_i32_14 = arith.constant 0 : i32
    %15 = arith.cmpi eq, %arg1, %c0_i32_14 : i32
    %16 = arith.extui %15 : i1 to i32
    %c0_i32_15 = arith.constant 0 : i32
    %17 = arith.cmpi ne, %16, %c0_i32_15 : i32
    scf.if %17 {
      %c0_16 = arith.constant 0 : index
      %c0_17 = arith.constant 0 : index
      %18 = vector.load %arg4[%c0_16, %c0_17] : memref<8x1xf32, #tpu.memory_space<vmem>>, vector<8x1xf32>
      %c0_18 = arith.constant 0 : index
      %c0_19 = arith.constant 0 : index
      %19 = vector.load %arg8[%c0_18, %c0_19] : memref<8x32xf32, #tpu.memory_space<vmem>>, vector<8x32xf32>
      %20 = vector.broadcast %18 : vector<8x1xf32> to vector<8x32xf32>
      %21 = arith.mulf %20, %19 : vector<8x32xf32>
      %c0_20 = arith.constant 0 : index
      %c0_21 = arith.constant 0 : index
      %22 = vector.load %arg7[%c0_20, %c0_21] : memref<8x32xf32, #tpu.memory_space<vmem>>, vector<8x32xf32>
      tpu.vector_store %arg7[%c0_20, %c0_21], %21 {strides = array<i32>} : memref<8x32xf32, #tpu.memory_space<vmem>>, vector<8x32xf32>,
    } else {
    }
    return
  }
  func.func @transform_0(%arg0: i32, %arg1: i32, %arg2: memref<11xi32, #tpu.memory_space<smem>>) -> (i32, i32) {
    %c0_i32 = arith.constant 0 : i32
    %c0_i32_0 = arith.constant 0 : i32
    return %arg0, %c0_i32 : i32, i32
  }
  func.func @transform_1(%arg0: i32, %arg1: i32, %arg2: memref<11xi32, #tpu.memory_space<smem>>) -> (i32, i32) {
    %c0_i32 = arith.constant 0 : i32
    %c0_i32_0 = arith.constant 0 : i32
    return %arg0, %c0_i32 : i32, i32
  }
  func.func @transform_2(%arg0: i32, %arg1: i32, %arg2: memref<11xi32, #tpu.memory_space<smem>>) -> (i32, i32, i32) {
    %0 = arith.index_cast %arg0 : i32 to index
    %1 = memref.load %arg2[%0] : memref<11xi32, #tpu.memory_space<smem>>
    %c0_i32 = arith.constant 0 : i32
    %c0_i32_0 = arith.constant 0 : i32
    return %1, %c0_i32, %arg1 : i32, i32, i32
  }
  func.func @transform_3(%arg0: i32, %arg1: i32, %arg2: memref<11xi32, #tpu.memory_space<smem>>) -> (i32, i32, i32) {
    %0 = arith.index_cast %arg0 : i32 to index
    %1 = memref.load %arg2[%0] : memref<11xi32, #tpu.memory_space<smem>>
    %c0_i32 = arith.constant 0 : i32
    %c0_i32_0 = arith.constant 0 : i32
    return %1, %arg1, %c0_i32 : i32, i32, i32
  }
  func.func @transform_4(%arg0: i32, %arg1: i32, %arg2: memref<11xi32, #tpu.memory_space<smem>>) -> (i32, i32) {
    %c0_i32 = arith.constant 0 : i32
    %c0_i32_0 = arith.constant 0 : i32
    return %arg0, %c0_i32 : i32, i32
  }
}

</mosaic_0001>

<llo_original>
// kernel: tpu_custom_call.1
$region0: #{tpu_custom_call.1}
  #allocation0 [shape = 'u32[]', space=smem, size = 0x4, offset = 0x4, fixed_abs, tag = 'smem constant byte address 0x4 - core index']
  #allocation1 [shape = 'u32[72,128]{1,0:T(1,128)}', space=vmem, size = 0x9000, scoped, tag = 'internal scratch']
  #allocation2 [shape = 'f32[8,32]{1,0:T(8,128)}', space=vmem, size = 0x1000, scoped, tag = 'scratch operand']
  #allocation3 [shape = 's32[1]{0}', space=sflag, size = 0x4, scoped, tag = 'scoped memory for tpu_custom_call.1']
  #allocation4 [shape = 'u8[512]{0}', space=smem, size = 0x200, scoped, tag = 'prefetched SMEM operand 0']
  %s0 = inlined_call_operand.vmem [shape: s32[11], index: 0, kind: input, shape index: {}]
  %s1 = inlined_call_operand.vmem [shape: f32[88,32], index: 1, kind: input, shape index: {}]
  %s2 = inlined_call_operand.vmem [shape: f32[88,1], index: 2, kind: input, shape index: {}]
  %s3 = inlined_call_operand.vmem [shape: f32[8,32,64], index: 3, kind: input, shape index: {}]
  %s4 = inlined_call_operand.vmem [shape: f32[8,64,32], index: 4, kind: input, shape index: {}]
  %s5 = inlined_call_operand.vmem [shape: f32[88,32], index: 5, kind: output, shape index: {}]
  %s6 = sld [smem:[#allocation0]]
  $region57: #{tpu_custom_call.1} parent=0
    _
  %s8 = ssub.s32 1, %s6
  %s9 = scalar_select 0, %s8, %s6
  %s11 = sshll.u32 %s0, 4
  %s12 = int_to_ptr.vmem [resolvable:$true] %s11
  %14 = dma.vmem_to_smem %s12, 16, [#allocation4], [#allocation3]
  %16 = dma.done [#allocation3], 16
  %17 = sfence
  loop: start=0, step=1, limit=13
  $region2: #{tpu_custom_call.1} parent=0 // loop_pre_header
    _
  $region3: #{tpu_custom_call.1} parent=0 // loop_header
    %s19 = sphi 0, %s23
    %p20 = scmp.ge.s32.totalorder %s19, 13
    %s26 = sphi 0, %s38
    %s27 = sphi 0, %s34
    %s28 = sphi 0, %s26
    %s29 = sphi 0, %s27
    %s30 = sphi 0, %s28
    %s31 = sphi 0, %s29
    %s41 = sphi 0, %s43
    %s44 = sphi 0, %s41
    %s45 = sphi 0, %s44
    %s61 = sphi 0, %s45
    %s67 = sphi 0, %s69
    %s70 = sphi 0, %s67
    %s71 = sphi 0, %s70
    %s87 = sphi 0, %s71
    %s97 = sphi 0, %s99
    %s100 = sphi 0, %s97
    %s101 = sphi 0, %s100
    %s117 = sphi 0, %s101
    %s127 = sphi 0, %s129
    %s130 = sphi 0, %s127
    %s131 = sphi 0, %s130
    %s147 = sphi 0, %s131
    %s153 = sphi 0, %s155
    %s156 = sphi 0, %s153
    %s157 = sphi 0, %s156
    %s173 = sphi 0, %s157
  $region4: #{tpu_custom_call.1} parent=0 // loop_header_branch
    %22 = sbr.rel (%p20) target = $region8
  $region5: #{tpu_custom_call.1} parent=0 // loop_body
    %s24 = ssub.s32 %s19, 1
    %s25 = ssub.s32 %s19, 2
    %s32 = sadd.s32 1, %s27
    %p33 = scmp.ge.s32.totalorder %s32, 1
    %s34 = scalar_select %p33, 0, %s32
    %s35 = sadd.s32 1, %s26
    %s36 = scalar_select %p33, %s35, %s26
    %p37 = scmp.ge.s32.totalorder %s36, 11
    %s38 = scalar_select %p37, 0, %s36
    %s39 = ssub.s32 %s26, %s38
    %p40 = scmp.eq.s32.totalorder %s39, 0
    %s42 = sadd.s32 %s41, 1
    %s43 = scalar_select %p40, %s41, %s42
    %p46 = pneg %p40
    %p47 = scmp.eq.s32.totalorder %s19, 10
    %p48 = por %p46, %p47
    %p49 = scmp.ne.s32.totalorder %s41, %s44
    %p50 = scmp.eq.s32.totalorder %s19, 0
    %p51 = por %p49, %p50
    %p52 = scmp.ne.s32.totalorder %s41, %s44
    %p53 = scmp.eq.s32.totalorder %s24, 10
    %p54 = por %p52, %p53
    %p55 = scmp.ne.s32.totalorder %s44, %s45
    %p56 = scmp.eq.s32.totalorder %s24, 0
    %p57 = por %p55, %p56
    %p58 = scmp.ne.s32.totalorder %s44, %s45
    %p59 = scmp.eq.s32.totalorder %s25, 10
    %p60 = por %p58, %p59
    %p62 = scmp.ne.s32.totalorder %s45, %s61
    %p63 = scmp.eq.s32.totalorder %s25, 0
    %p64 = por %p62, %p63
    %s65 = ssub.s32 %s26, %s38
    %p66 = scmp.eq.s32.totalorder %s65, 0
    %s68 = sadd.s32 %s67, 1
    %s69 = scalar_select %p66, %s67, %s68
    %p72 = pneg %p66
    %p73 = scmp.eq.s32.totalorder %s19, 10
    %p74 = por %p72, %p73
    %p75 = scmp.ne.s32.totalorder %s67, %s70
    %p76 = scmp.eq.s32.totalorder %s19, 0
    %p77 = por %p75, %p76
    %p78 = scmp.ne.s32.totalorder %s67, %s70
    %p79 = scmp.eq.s32.totalorder %s24, 10
    %p80 = por %p78, %p79
    %p81 = scmp.ne.s32.totalorder %s70, %s71
    %p82 = scmp.eq.s32.totalorder %s24, 0
    %p83 = por %p81, %p82
    %p84 = scmp.ne.s32.totalorder %s70, %s71
    %p85 = scmp.eq.s32.totalorder %s25, 10
    %p86 = por %p84, %p85
    %p88 = scmp.ne.s32.totalorder %s71, %s87
    %p89 = scmp.eq.s32.totalorder %s25, 0
    %p90 = por %p88, %p89
    %s91 = sld [smem:[#allocation4 + %s26]]
    %s92 = sld [smem:[#allocation4 + %s38]]
    %s93 = ssub.s32 %s91, %s92
    %s94 = ssub.s32 %s27, %s34
    %s95 = sor.u32 %s93, %s94
    %p96 = scmp.eq.s32.totalorder %s95, 0
    %s98 = sadd.s32 %s97, 1
    %s99 = scalar_select %p96, %s97, %s98
    %p102 = pneg %p96
    %p103 = scmp.eq.s32.totalorder %s19, 10
    %p104 = por %p102, %p103
    %p105 = scmp.ne.s32.totalorder %s97, %s100
    %p106 = scmp.eq.s32.totalorder %s19, 0
    %p107 = por %p105, %p106
    %p108 = scmp.ne.s32.totalorder %s97, %s100
    %p109 = scmp.eq.s32.totalorder %s24, 10
    %p110 = por %p108, %p109
    %p111 = scmp.ne.s32.totalorder %s100, %s101
    %p112 = scmp.eq.s32.totalorder %s24, 0
    %p113 = por %p111, %p112
    %p114 = scmp.ne.s32.totalorder %s100, %s101
    %p115 = scmp.eq.s32.totalorder %s25, 10
    %p116 = por %p114, %p115
    %p118 = scmp.ne.s32.totalorder %s101, %s117
    %p119 = scmp.eq.s32.totalorder %s25, 0
    %p120 = por %p118, %p119
    %s121 = sld [smem:[#allocation4 + %s26]]
    %s122 = sld [smem:[#allocation4 + %s38]]
    %s123 = ssub.s32 %s121, %s122
    %s124 = ssub.s32 %s27, %s34
    %s125 = sor.u32 %s123, %s124
    %p126 = scmp.eq.s32.totalorder %s125, 0
    %s128 = sadd.s32 %s127, 1
    %s129 = scalar_select %p126, %s127, %s128
    %p132 = pneg %p126
    %p133 = scmp.eq.s32.totalorder %s19, 10
    %p134 = por %p132, %p133
    %p135 = scmp.ne.s32.totalorder %s127, %s130
    %p136 = scmp.eq.s32.totalorder %s19, 0
    %p137 = por %p135, %p136
    %p138 = scmp.ne.s32.totalorder %s127, %s130
    %p139 = scmp.eq.s32.totalorder %s24, 10
    %p140 = por %p138, %p139
    %p141 = scmp.ne.s32.totalorder %s130, %s131
    %p142 = scmp.eq.s32.totalorder %s24, 0
    %p143 = por %p141, %p142
    %p144 = scmp.ne.s32.totalorder %s130, %s131
    %p145 = scmp.eq.s32.totalorder %s25, 10
    %p146 = por %p144, %p145
    %p148 = scmp.ne.s32.totalorder %s131, %s147
    %p149 = scmp.eq.s32.totalorder %s25, 0
    %p150 = por %p148, %p149
    %s151 = ssub.s32 %s26, %s38
    %p152 = scmp.eq.s32.totalorder %s151, 0
    %s154 = sadd.s32 %s153, 1
    %s155 = scalar_select %p152, %s153, %s154
    %p158 = pneg %p152
    %p159 = scmp.eq.s32.totalorder %s19, 10
    %p160 = por %p158, %p159
    %p161 = scmp.ne.s32.totalorder %s153, %s156
    %p162 = scmp.eq.s32.totalorder %s19, 0
    %p163 = por %p161, %p162
    %p164 = scmp.ne.s32.totalorder %s153, %s156
    %p165 = scmp.eq.s32.totalorder %s24, 10
    %p166 = por %p164, %p165
    %p167 = scmp.ne.s32.totalorder %s156, %s157
    %p168 = scmp.eq.s32.totalorder %s24, 0
    %p169 = por %p167, %p168
    %p170 = scmp.ne.s32.totalorder %s156, %s157
    %p171 = scmp.eq.s32.totalorder %s25, 10
    %p172 = por %p170, %p171
    %p174 = scmp.ne.s32.totalorder %s157, %s173
    %p175 = scmp.eq.s32.totalorder %s25, 0
    %p176 = por %p174, %p175
    %p177 = scmp.le.s32.totalorder 1, %s19
    %p178 = scmp.lt.s32.totalorder %s19, 12
    %p179 = pnand %p177, %p178
    %p180 = pneg %p179
    // Predicated region
    $region9: #{tpu_custom_call.1} parent=5 // pred_check
      _
    $region10: #{tpu_custom_call.1} parent=5 // pred_check_branch
      %182 = sbr.rel (%p179) target = $region12
    $region11: #{tpu_custom_call.1} parent=5 // pred_region
      %s183 = ssub.s32 %s19, 1
    $region12: #{tpu_custom_call.1} parent=5 // pred_fallthru
      _
    %p184 = scmp.lt.s32.totalorder %s19, 11
    // Predicated region
    $region13: #{tpu_custom_call.1} parent=5 // pred_check
      %p185 = pneg %p184
    $region14: #{tpu_custom_call.1} parent=5 // pred_check_branch
      %187 = sbr.rel (%p185) target = $region16
    $region15: #{tpu_custom_call.1} parent=5 // pred_region
      // Predicated region
      $region17: #{tpu_custom_call.1} parent=15 // pred_check
        %p188 = pneg %p51
      $region18: #{tpu_custom_call.1} parent=15 // pred_check_branch
        %190 = sbr.rel (%p188) target = $region20
      $region19: #{tpu_custom_call.1} parent=15 // pred_region
        %p191 = scmp.lt.s32.totalorder %s26, 10
        %s192 = scalar_select %p191, %s26, 10
        %s193 = smul.addr %s192, 8
        %s194 = scalar_lea.vmem %s1, %s193
      $region20: #{tpu_custom_call.1} parent=15 // pred_fallthru
        _
      // Predicated region
      $region21: #{tpu_custom_call.1} parent=15 // pred_check
        %p195 = pneg %p77
      $region22: #{tpu_custom_call.1} parent=15 // pred_check_branch
        %197 = sbr.rel (%p195) target = $region24
      $region23: #{tpu_custom_call.1} parent=15 // pred_region
        %p198 = scmp.lt.s32.totalorder %s26, 10
        %s199 = scalar_select %p198, %s26, 10
        %s200 = smul.addr %s199, 8
        %s201 = scalar_lea.vmem %s2, %s200
      $region24: #{tpu_custom_call.1} parent=15 // pred_fallthru
        _
      // Predicated region
      $region25: #{tpu_custom_call.1} parent=15 // pred_check
        %p202 = pneg %p107
      $region26: #{tpu_custom_call.1} parent=15 // pred_check_branch
        %204 = sbr.rel (%p202) target = $region28
      $region27: #{tpu_custom_call.1} parent=15 // pred_region
        %s205 = sld [smem:[#allocation4 + %s26]]
        %p206 = scmp.lt.s32.totalorder %s205, 7
        %s207 = scalar_select %p206, %s205, 7
        %p208 = scmp.lt.s32.totalorder %s27, 0
        %s209 = scalar_select %p208, %s27, 0
        %s210 = smul.addr %s207, 4
        %s211 = sadd.s32 %s209, %s210
        %s212 = smul.addr %s211, 8
        %s213 = scalar_lea.vmem %s3, %s212
        %s214 = sld [smem:[#allocation4 + %s26]]
      $region28: #{tpu_custom_call.1} parent=15 // pred_fallthru
        _
      // Predicated region
      $region29: #{tpu_custom_call.1} parent=15 // pred_check
        %p215 = pneg %p137
      $region30: #{tpu_custom_call.1} parent=15 // pred_check_branch
        %217 = sbr.rel (%p215) target = $region32
      $region31: #{tpu_custom_call.1} parent=15 // pred_region
        %s218 = sld [smem:[#allocation4 + %s26]]
        %s219 = smul.u32 8, %s27
        %p220 = scmp.lt.s32.totalorder %s218, 7
        %s221 = scalar_select %p220, %s218, 7
        %p222 = scmp.lt.s32.totalorder %s219, 7
        %s223 = scalar_select %p222, %s219, 7
        %s224 = smul.addr %s221, 8
        %s225 = sadd.s32 %s223, %s224
        %s226 = smul.addr %s225, 8
        %s227 = scalar_lea.vmem %s4, %s226
        %s228 = sld [smem:[#allocation4 + %s26]]
        %s229 = smul.u32 8, %s27
      $region32: #{tpu_custom_call.1} parent=15 // pred_fallthru
        _
    $region16: #{tpu_custom_call.1} parent=5 // pred_fallthru
      _
    %p230 = scmp.le.s32.totalorder 1, %s19
    %p231 = scmp.lt.s32.totalorder %s19, 12
    %p232 = pnand %p230, %p231
    %p233 = pneg %p232
    // Predicated region
    $region33: #{tpu_custom_call.1} parent=5 // pred_check
      _
    $region34: #{tpu_custom_call.1} parent=5 // pred_check_branch
      %235 = sbr.rel (%p232) target = $region36
    $region35: #{tpu_custom_call.1} parent=5 // pred_region
      %s236 = ssub.s32 %s19, 1
      %p237 = scmp.lt.s32.totalorder %s28, 10
      %s238 = scalar_select %p237, %s28, 10
      %s239 = smul.addr %s238, 8
      %s240 = scalar_lea.vmem %s1, %s239
      %p241 = pneg %p57
      %p242 = pneg %p54
      %p243 = scmp.lt.s32.totalorder %s28, 10
      %s244 = scalar_select %p243, %s28, 10
      %s245 = smul.addr %s244, 8
      %s246 = scalar_lea.vmem %s2, %s245
      %p247 = pneg %p83
      %p248 = pneg %p80
      %s249 = sld [smem:[#allocation4 + %s28]]
      %p250 = scmp.lt.s32.totalorder %s249, 7
      %s251 = scalar_select %p250, %s249, 7
      %p252 = scmp.lt.s32.totalorder %s29, 0
      %s253 = scalar_select %p252, %s29, 0
      %s254 = smul.addr %s251, 4
      %s255 = sadd.s32 %s253, %s254
      %s256 = smul.addr %s255, 8
      %s257 = scalar_lea.vmem %s3, %s256
      %p258 = pneg %p113
      %p259 = pneg %p110
      %s260 = sld [smem:[#allocation4 + %s28]]
      %s261 = smul.u32 8, %s29
      %p262 = scmp.lt.s32.totalorder %s260, 7
      %s263 = scalar_select %p262, %s260, 7
      %p264 = scmp.lt.s32.totalorder %s261, 7
      %s265 = scalar_select %p264, %s261, 7
      %s266 = smul.addr %s263, 8
      %s267 = sadd.s32 %s265, %s266
      %s268 = smul.addr %s267, 8
      %s269 = scalar_lea.vmem %s4, %s268
      %p270 = pneg %p143
      %p271 = pneg %p140
      %p272 = pneg %p169
      %p273 = pneg %p166
      %p274 = scmp.lt.s32.totalorder %s28, 10
      %s275 = scalar_select %p274, %s28, 10
      %s276 = smul.addr %s275, 8
      %s277 = scalar_lea.vmem %s5, %s276
      %p278 = scmp.lt.s32.totalorder %s28, 10
      %s279 = scalar_select %p278, %s28, 10
      %s280 = smul.addr %s279, 8
      %s281 = scalar_lea.vmem %s1, %s280
      %p282 = scmp.lt.s32.totalorder %s28, 10
      %s283 = scalar_select %p282, %s28, 10
      %s284 = smul.addr %s283, 8
      %s285 = scalar_lea.vmem %s2, %s284
      %s286 = sld [smem:[#allocation4 + %s28]]
      %p287 = scmp.lt.s32.totalorder %s286, 7
      %s288 = scalar_select %p287, %s286, 7
      %p289 = scmp.lt.s32.totalorder %s29, 0
      %s290 = scalar_select %p289, %s29, 0
      %s291 = smul.addr %s288, 4
      %s292 = sadd.s32 %s290, %s291
      %s293 = smul.addr %s292, 8
      %s294 = scalar_lea.vmem %s3, %s293
      %s295 = sld [smem:[#allocation4 + %s28]]
      %s296 = sld [smem:[#allocation4 + %s28]]
      %s297 = smul.u32 8, %s29
      %p298 = scmp.lt.s32.totalorder %s296, 7
      %s299 = scalar_select %p298, %s296, 7
      %p300 = scmp.lt.s32.totalorder %s297, 7
      %s301 = scalar_select %p300, %s297, 7
      %s302 = smul.addr %s299, 8
      %s303 = sadd.s32 %s301, %s302
      %s304 = smul.addr %s303, 8
      %s305 = scalar_lea.vmem %s4, %s304
      %s306 = sld [smem:[#allocation4 + %s28]]
      %s307 = smul.u32 8, %s29
      %p308 = scmp.lt.s32.totalorder %s28, 10
      %s309 = scalar_select %p308, %s28, 10
      %s310 = smul.addr %s309, 8
      %s311 = scalar_lea.vmem %s5, %s310
      %p312 = scmp.eq.s32.totalorder %s29, 0
      // Predicated region
      $region37: #{tpu_custom_call.1} parent=35 // pred_check
        %p313 = pneg %p312
      $region38: #{tpu_custom_call.1} parent=35 // pred_check_branch
        %315 = sbr.rel (%p313) target = $region40
      $region39: #{tpu_custom_call.1} parent=35 // pred_region
        %vm316 = vcmask 261120
        %317 = vst.msk [vmem:[#allocation2] sm:$0xff] %vm316, 0.0
      $region40: #{tpu_custom_call.1} parent=35 // pred_fallthru
        _
      %v318 = vld [vmem:[%s281] sm:$0xff]
      %v319 = vld [vmem:[%s294] sm:$0xff]
      %v320 = vld [vmem:[%s294 + $0x8] sm:$0xff]
      %v321 = vld [vmem:[%s294 + $0x10] sm:$0xff]
      %v322 = vld [vmem:[%s294 + $0x18] sm:$0xff]
      %vm323 = vcmask 261120
      %v325 = vsel %vm323, %v318, 0
      %327 = vmatpush.msra.mxu0 0.0
      %328 = vmatpush.msra.mxu0 0.0
      %329 = vmatpush.msra.mxu0 0.0
      %330 = vmatpush.msra.mxu0 0.0
      %331 = vmatpush.msra.mxu0 0.0
      %332 = vmatpush.msra.mxu0 0.0
      %333 = vmatpush.msra.mxu0 0.0
      %334 = vmatpush.msra.mxu0 0.0
      %335 = vmatpush.msra.mxu0 0.0
      %336 = vmatpush.msra.mxu0 0.0
      %337 = vmatpush.msra.mxu0 0.0
      %338 = vmatpush.msra.mxu0 0.0
      %339 = vmatpush.msra.mxu0 %v322
      %340 = vmatpush.msra.mxu0 %v321
      %341 = vmatpush.msra.mxu0 %v320
      %342 = vmatpush.msra.mxu0 %v319
      %343 = vmatmul.f32.gmra.mxu0 %v325
      %v344 = vpop.f32.mrf.mxu0
      %v345 = vadd.f32 0.0, %v344
      %346 = vdwg.mxu0
      %v347 = vmax.f32 %v345, 0.0
      %v348 = vld [vmem:[#allocation2] sm:$0xff]
      %v349 = vld [vmem:[%s305] sm:$0xff]
      %v350 = vld [vmem:[%s305 + $0x8] sm:$0xff]
      %v351 = vld [vmem:[%s305 + $0x10] sm:$0xff]
      %v352 = vld [vmem:[%s305 + $0x18] sm:$0xff]
      %v353 = vld [vmem:[%s305 + $0x20] sm:$0xff]
      %v354 = vld [vmem:[%s305 + $0x28] sm:$0xff]
      %v355 = vld [vmem:[%s305 + $0x30] sm:$0xff]
      %v356 = vld [vmem:[%s305 + $0x38] sm:$0xff]
      %vm357 = vcmask 523264
      %v359 = vsel %vm357, %v347, 0
      %361 = vmatpush.msra.mxu0 0.0
      %362 = vmatpush.msra.mxu0 0.0
      %363 = vmatpush.msra.mxu0 0.0
      %364 = vmatpush.msra.mxu0 0.0
      %365 = vmatpush.msra.mxu0 0.0
      %366 = vmatpush.msra.mxu0 0.0
      %367 = vmatpush.msra.mxu0 0.0
      %368 = vmatpush.msra.mxu0 0.0
      %369 = vmatpush.msra.mxu0 %v356
      %370 = vmatpush.msra.mxu0 %v355
      %371 = vmatpush.msra.mxu0 %v354
      %372 = vmatpush.msra.mxu0 %v353
      %373 = vmatpush.msra.mxu0 %v352
      %374 = vmatpush.msra.mxu0 %v351
      %375 = vmatpush.msra.mxu0 %v350
      %376 = vmatpush.msra.mxu0 %v349
      %377 = vmatmul.f32.gmra.mxu0 %v359
      %v378 = vpop.f32.mrf.mxu0
      %v379 = vadd.f32 0.0, %v378
      %380 = vdwg.mxu0
      %v381 = vadd.f32 %v348, %v379
      %382 = vst.msk [vmem:[#allocation2] sm:$0xff] %vm323, %v381
      // Predicated region
      $region41: #{tpu_custom_call.1} parent=35 // pred_check
        %p383 = pneg %p312
      $region42: #{tpu_custom_call.1} parent=35 // pred_check_branch
        %385 = sbr.rel (%p383) target = $region44
      $region43: #{tpu_custom_call.1} parent=35 // pred_region
        %v386 = vld [vmem:[%s285] sm:$0xff]
        %v387 = vld [vmem:[#allocation2] sm:$0xff]
        %389 = vset.pattern.permute.xlu0 0
        %390 = vperm.xlu0 %389, %v386
        %v391 = vpop.permute.xlu0 %390
        %v393 = vmul.f32 %v391, %v387
        %394 = vst.msk [vmem:[%s311] sm:$0xff] %vm323, %v393
      $region44: #{tpu_custom_call.1} parent=35 // pred_fallthru
        _
      %p395 = scmp.lt.s32.totalorder %s28, 10
      %s396 = scalar_select %p395, %s28, 10
      %s397 = smul.addr %s396, 8
      %s398 = scalar_lea.vmem %s5, %s397
      // Predicated region
      $region45: #{tpu_custom_call.1} parent=35 // pred_check
        %p399 = pneg %p166
      $region46: #{tpu_custom_call.1} parent=35 // pred_check_branch
        %401 = sbr.rel (%p399) target = $region48
      $region47: #{tpu_custom_call.1} parent=35 // pred_region
        _
      $region48: #{tpu_custom_call.1} parent=35 // pred_fallthru
        _
    $region36: #{tpu_custom_call.1} parent=5 // pred_fallthru
      _
    %p402 = scmp.le.s32.totalorder 2, %s19
    // Predicated region
    $region49: #{tpu_custom_call.1} parent=5 // pred_check
      %p403 = pneg %p402
    $region50: #{tpu_custom_call.1} parent=5 // pred_check_branch
      %405 = sbr.rel (%p403) target = $region52
    $region51: #{tpu_custom_call.1} parent=5 // pred_region
      %s406 = ssub.s32 %s19, 2
      // Predicated region
      $region53: #{tpu_custom_call.1} parent=51 // pred_check
        %p407 = pneg %p172
      $region54: #{tpu_custom_call.1} parent=51 // pred_check_branch
        %409 = sbr.rel (%p407) target = $region56
      $region55: #{tpu_custom_call.1} parent=51 // pred_region
        %p410 = scmp.lt.s32.totalorder %s30, 10
        %s411 = scalar_select %p410, %s30, 10
        %s412 = smul.addr %s411, 8
        %s413 = scalar_lea.vmem %s5, %s412
      $region56: #{tpu_custom_call.1} parent=51 // pred_fallthru
        _
    $region52: #{tpu_custom_call.1} parent=5 // pred_fallthru
      _
  $region6: #{tpu_custom_call.1} parent=0 // loop_footer
    %s23 = sadd.s32 1, %s19
  $region7: #{tpu_custom_call.1} parent=0 // loop_footer_branch
    %18 = sbr.rel target = $region3
  $region8: #{tpu_custom_call.1} parent=0 // loop_exit
    _

</llo_original>
